<compile_context>
chip_gen: v7x
topology: tpu7x:2x2x1
jax: 0.10.0
libtpu: 0.0.40
codegen_flags: <defaults>
</compile_context>

<pallas_src>
import functools

import jax
import jax.numpy as jnp
from jax.experimental import pallas as pl
from jax.experimental.pallas import tpu as pltpu

BN_EPS = 1e-5
LANE = 128


def _round_up(n: int, m: int = LANE) -> int:
    return ((n + m - 1) // m) * m


def _batchnorm_train(h):
    """Training-mode BatchNorm1d, single centering pass.

    mean and E[h^2] come from the same tile; var = E[h^2] - mean^2; the centered
    activations hc are computed once and reused for the normalize. rsqrt goes to EUP.
    """
    mean = jnp.mean(h, axis=0, keepdims=True)
    mean_sq = jnp.mean(h * h, axis=0, keepdims=True)
    var = jnp.maximum(mean_sq - mean * mean, 0.0)
    hc = h - mean
    return hc * jax.lax.rsqrt(var + BN_EPS)


def _densenet_kernel(n_blocks, x_ref, w_stem_ref, w_blk_ref, b2_ref,
                     w_out_ref, b_out_ref, out_ref):
    """Whole-network forward on one program.

    x_ref:      (B, D_in_pad)            f32
    w_stem_ref: (D_in_pad, H_pad)        bf16
    w_blk_ref:  (n_blocks, 2, H_pad, H_pad) bf16   [.., 0, :, :] = linear1, [.., 1, :, :] = linear2
    b2_ref:     (n_blocks, 1, H_pad)     f32       (linear2 bias; feeds residual, kept)
    w_out_ref:  (H_pad, C_pad)           bf16
    b_out_ref:  (1, C_pad)               f32
    out_ref:    (B, C_pad)               f32
    Stem bias and block linear1 bias are omitted: BN immediately follows, so they
    cancel exactly for any bias value.
    """

    def mxu(a_f32, w_bf16):
        return jnp.dot(a_f32.astype(jnp.bfloat16), w_bf16,
                       preferred_element_type=jnp.float32)

    # Stem: Linear (bias BN-cancelled) -> BN -> ReLU
    h = mxu(x_ref[...], w_stem_ref[...])
    h = jnp.maximum(_batchnorm_train(h), 0.0)

    for blk in range(n_blocks):
        identity = h
        out = jnp.maximum(_batchnorm_train(h), 0.0)          # bn1 -> relu
        out = mxu(out, w_blk_ref[blk, 0])                    # linear1 (bias BN-cancelled)
        out = jnp.maximum(_batchnorm_train(out), 0.0)        # bn2 -> relu
        out = mxu(out, w_blk_ref[blk, 1]) + b2_ref[blk]      # linear2 + bias
        h = out + identity                                   # residual

    # Head: Linear to (padded) n_classes
    out_ref[...] = mxu(h, w_out_ref[...]) + b_out_ref[...]


def init_params(key, n_dims_in, n_dims_hidden, n_classes, n_blocks):
    """Kaiming-uniform (relu gain) weights, PyTorch-default uniform biases.

    Weights are stored transposed vs PyTorch, i.e. (in_features, out_features), and
    every feature dim is zero-padded to a multiple of 128 (lane-dense). Returned f32;
    the wrapper casts the weight matrices to bf16 for the MXU.
    b_stem / b1 are returned only so the PyTorch-semantics reference can exercise the
    bias-before-BN cancellation; the kernel never reads them.
    """
    d_in_p = _round_up(n_dims_in)
    h_p = _round_up(n_dims_hidden)
    c_p = _round_up(n_classes)

    def linear(k, fan_in, fan_out, fan_in_p, fan_out_p):
        kw, kb = jax.random.split(k)
        w_bound = (6.0 / fan_in) ** 0.5            # kaiming_uniform_, nonlinearity='relu'
        b_bound = 1.0 / fan_in ** 0.5              # PyTorch nn.Linear default bias init
        w = jax.random.uniform(kw, (fan_in, fan_out), jnp.float32, -w_bound, w_bound)
        b = jax.random.uniform(kb, (1, fan_out), jnp.float32, -b_bound, b_bound)
        w = jnp.pad(w, ((0, fan_in_p - fan_in), (0, fan_out_p - fan_out)))
        b = jnp.pad(b, ((0, 0), (0, fan_out_p - fan_out)))
        return w, b

    key, k_stem, k_out = jax.random.split(key, 3)
    w_stem, b_stem = linear(k_stem, n_dims_in, n_dims_hidden, d_in_p, h_p)

    w1s, b1s, w2s, b2s = [], [], [], []
    for _ in range(n_blocks):
        key, k1, k2 = jax.random.split(key, 3)
        w1, b1 = linear(k1, n_dims_hidden, n_dims_hidden, h_p, h_p)
        w2, b2 = linear(k2, n_dims_hidden, n_dims_hidden, h_p, h_p)
        w1s.append(w1); b1s.append(b1); w2s.append(w2); b2s.append(b2)

    w_out, b_out = linear(k_out, n_dims_hidden, n_classes, h_p, c_p)

    return {
        "w_stem": w_stem,
        "b_stem": b_stem,                                            # BN-cancelled (ref only)
        "w_blocks": jnp.stack([jnp.stack([w1s[i], w2s[i]]) for i in range(n_blocks)]),
        "b1": jnp.stack(b1s),                                        # BN-cancelled (ref only)
        "b2": jnp.stack(b2s),
        "w_out": w_out,
        "b_out": b_out,
    }


def densenet_forward(x, params, n_blocks, n_dims_in, n_classes):
    """Glue: flatten like x.view(-1, n_dims_in), lane-pad, run the kernel, slice back."""
    x2d = x.reshape(-1, n_dims_in).astype(jnp.float32)
    batch = x2d.shape[0]
    d_in_p = params["w_stem"].shape[0]
    c_p = params["w_out"].shape[1]
    x_pad = jnp.pad(x2d, ((0, 0), (0, d_in_p - n_dims_in)))

    kernel = functools.partial(_densenet_kernel, n_blocks)

    out_pad = pl.pallas_call(
        kernel,
        out_shape=jax.ShapeDtypeStruct((batch, c_p), jnp.float32),
        in_specs=[pl.BlockSpec(memory_space=pltpu.MemorySpace.VMEM)] * 6,
        out_specs=pl.BlockSpec(memory_space=pltpu.MemorySpace.VMEM),
    )(
        x_pad,
        params["w_stem"].astype(jnp.bfloat16),
        params["w_blocks"].astype(jnp.bfloat16),
        params["b2"],
        params["w_out"].astype(jnp.bfloat16),
        params["b_out"],
    )
    return out_pad[:, :n_classes]


def reference_forward_kernel_math(x, params, n_blocks, n_dims_in, n_classes):
    """Pure-JAX mirror of the kernel math (bf16 MXU operands, BN-cancelled biases dropped)."""
    d_in_p = params["w_stem"].shape[0]
    h = x.reshape(-1, n_dims_in).astype(jnp.float32)
    h = jnp.pad(h, ((0, 0), (0, d_in_p - n_dims_in)))

    def mxu(a, w):
        return jnp.dot(a.astype(jnp.bfloat16), w.astype(jnp.bfloat16),
                       preferred_element_type=jnp.float32)

    h = jnp.maximum(_batchnorm_train(mxu(h, params["w_stem"])), 0.0)
    for blk in range(n_blocks):
        identity = h
        out = jnp.maximum(_batchnorm_train(h), 0.0)
        out = mxu(out, params["w_blocks"][blk, 0])
        out = jnp.maximum(_batchnorm_train(out), 0.0)
        out = mxu(out, params["w_blocks"][blk, 1]) + params["b2"][blk]
        h = out + identity
    return (mxu(h, params["w_out"]) + params["b_out"])[:, :n_classes]


def reference_forward_pytorch(x, params, n_blocks, n_dims_in, n_classes):
    """Full-f32 reference with PyTorch training-mode BN and ALL bias adds included."""
    def bn(h):
        mean = jnp.mean(h, axis=0, keepdims=True)
        var = jnp.mean((h - mean) ** 2, axis=0, keepdims=True)
        return (h - mean) / jnp.sqrt(var + BN_EPS)

    d_in_p = params["w_stem"].shape[0]
    h = x.reshape(-1, n_dims_in).astype(jnp.float32)
    h = jnp.pad(h, ((0, 0), (0, d_in_p - n_dims_in)))
    h = h @ params["w_stem"] + params["b_stem"]
    h = jnp.maximum(bn(h), 0.0)
    for blk in range(n_blocks):
        identity = h
        out = jnp.maximum(bn(h), 0.0)
        out = out @ params["w_blocks"][blk, 0] + params["b1"][blk]
        out = jnp.maximum(bn(out), 0.0)
        out = out @ params["w_blocks"][blk, 1] + params["b2"][blk]
        h = out + identity
    return (h @ params["w_out"] + params["b_out"])[:, :n_classes]


if __name__ == "__main__":
    config = {
        "input_shape": (4, 4, 4),   # n_dims_in = 64
        "n_dims_hidden": 32,
        "n_classes": 10,
        "n_dense_blocks": 2,
    }
    n_dims_in = 4 * 4 * 4
    batch = 8

    key = jax.random.PRNGKey(0)
    key, xk, pk = jax.random.split(key, 3)
    x = jax.random.normal(xk, (batch,) + config["input_shape"], jnp.float32)
    params = init_params(pk, n_dims_in, config["n_dims_hidden"],
                         config["n_classes"], config["n_dense_blocks"])

    out = densenet_forward(x, params, config["n_dense_blocks"],
                           n_dims_in, config["n_classes"])
    out = jax.block_until_ready(out)
    assert out.shape == (batch, config["n_classes"])

    # Tight check: kernel vs a JAX mirror of the same math (bf16 dots, dropped no-op biases).
    ref_k = reference_forward_kernel_math(x, params, config["n_dense_blocks"],
                                          n_dims_in, config["n_classes"])
    assert jnp.allclose(out, ref_k, atol=2e-3, rtol=2e-3), "mismatch vs kernel-math reference"

    # Coarse check: kernel vs full-f32 PyTorch-semantics reference (includes the stem/linear1
    # biases that the kernel drops as exact BN no-ops). Difference is only bf16 MXU rounding.
    ref_pt = reference_forward_pytorch(x, params, config["n_dense_blocks"],
                                       n_dims_in, config["n_classes"])
    rel_err = jnp.max(jnp.abs(out - ref_pt)) / (jnp.max(jnp.abs(ref_pt)) + 1e-6)
    assert rel_err < 5e-2, f"mismatch vs f32 PyTorch reference (rel_err={rel_err})"

    print("KERNEL_OK")
</pallas_src>

<mosaic_0001>
module attributes {stable_mosaic.version = 11 : i64} {
  func.func @_densenet_kernel(%arg0: memref<8x128xf32, #tpu.memory_space<vmem>>, %arg1: memref<128x128xbf16, #tpu.memory_space<vmem>>, %arg2: memref<2x2x128x128xbf16, #tpu.memory_space<vmem>>, %arg3: memref<2x1x128xf32, #tpu.memory_space<vmem>>, %arg4: memref<128x128xbf16, #tpu.memory_space<vmem>>, %arg5: memref<1x128xf32, #tpu.memory_space<vmem>>, %arg6: memref<8x128xf32, #tpu.memory_space<vmem>>) attributes {dimension_semantics = [], scalar_prefetch = 0 : i64, scratch_operands = 0 : i64, tpu.core_type = #tpu.core_type<tc>} {
    %c0 = arith.constant 0 : index
    %c0_0 = arith.constant 0 : index
    %0 = vector.load %arg0[%c0, %c0_0] : memref<8x128xf32, #tpu.memory_space<vmem>>, vector<8x128xf32>
    %c0_1 = arith.constant 0 : index
    %c0_2 = arith.constant 0 : index
    %1 = vector.load %arg1[%c0_1, %c0_2] : memref<128x128xbf16, #tpu.memory_space<vmem>>, vector<128x128xbf16>
    %2 = arith.truncf %0 : vector<8x128xf32> to vector<8x128xbf16>
    %cst = arith.constant dense<0.000000e+00> : vector<8x128xf32>
    %3 = tpu.matmul %2, %1, %cst {dimension_numbers = #tpu.dot_dimension_numbers<[1], [0], [0], [1], [0, 0, 1, 1], [], []>} : vector<8x128xbf16>, vector<128x128xbf16>, vector<8x128xf32> -> vector<8x128xf32>
    %cst_3 = arith.constant dense<0.000000e+00> : vector<128xf32>
    %4 = vector.multi_reduction <add>, %3, %cst_3 [0] : vector<8x128xf32> to vector<128xf32>
    %5 = vector.shape_cast %4 : vector<128xf32> to vector<1x128xf32>
    %cst_4 = arith.constant 8.000000e+00 : f32
    %6 = vector.broadcast %cst_4 : f32 to vector<1x128xf32>
    %7 = arith.divf %5, %6 : vector<1x128xf32>
    %8 = arith.mulf %3, %3 : vector<8x128xf32>
    %cst_5 = arith.constant dense<0.000000e+00> : vector<128xf32>
    %9 = vector.multi_reduction <add>, %8, %cst_5 [0] : vector<8x128xf32> to vector<128xf32>
    %10 = vector.shape_cast %9 : vector<128xf32> to vector<1x128xf32>
    %cst_6 = arith.constant 8.000000e+00 : f32
    %11 = vector.broadcast %cst_6 : f32 to vector<1x128xf32>
    %12 = arith.divf %10, %11 : vector<1x128xf32>
    %13 = arith.mulf %7, %7 : vector<1x128xf32>
    %14 = arith.subf %12, %13 : vector<1x128xf32>
    %cst_7 = arith.constant 0.000000e+00 : f32
    %15 = vector.broadcast %cst_7 : f32 to vector<1x128xf32>
    %16 = arith.maximumf %14, %15 : vector<1x128xf32>
    %17 = vector.broadcast %7 : vector<1x128xf32> to vector<8x128xf32>
    %18 = arith.subf %3, %17 : vector<8x128xf32>
    %cst_8 = arith.constant 9.99999974E-6 : f32
    %19 = vector.broadcast %cst_8 : f32 to vector<1x128xf32>
    %20 = arith.addf %16, %19 : vector<1x128xf32>
    %21 = math.rsqrt %20 : vector<1x128xf32>
    %22 = vector.broadcast %21 : vector<1x128xf32> to vector<8x128xf32>
    %23 = arith.mulf %18, %22 : vector<8x128xf32>
    %cst_9 = arith.constant 0.000000e+00 : f32
    %24 = vector.broadcast %cst_9 : f32 to vector<8x128xf32>
    %25 = arith.maximumf %23, %24 : vector<8x128xf32>
    %cst_10 = arith.constant dense<0.000000e+00> : vector<128xf32>
    %26 = vector.multi_reduction <add>, %25, %cst_10 [0] : vector<8x128xf32> to vector<128xf32>
    %27 = vector.shape_cast %26 : vector<128xf32> to vector<1x128xf32>
    %cst_11 = arith.constant 8.000000e+00 : f32
    %28 = vector.broadcast %cst_11 : f32 to vector<1x128xf32>
    %29 = arith.divf %27, %28 : vector<1x128xf32>
    %30 = arith.mulf %25, %25 : vector<8x128xf32>
    %cst_12 = arith.constant dense<0.000000e+00> : vector<128xf32>
    %31 = vector.multi_reduction <add>, %30, %cst_12 [0] : vector<8x128xf32> to vector<128xf32>
    %32 = vector.shape_cast %31 : vector<128xf32> to vector<1x128xf32>
    %cst_13 = arith.constant 8.000000e+00 : f32
    %33 = vector.broadcast %cst_13 : f32 to vector<1x128xf32>
    %34 = arith.divf %32, %33 : vector<1x128xf32>
    %35 = arith.mulf %29, %29 : vector<1x128xf32>
    %36 = arith.subf %34, %35 : vector<1x128xf32>
    %cst_14 = arith.constant 0.000000e+00 : f32
    %37 = vector.broadcast %cst_14 : f32 to vector<1x128xf32>
    %38 = arith.maximumf %36, %37 : vector<1x128xf32>
    %39 = vector.broadcast %29 : vector<1x128xf32> to vector<8x128xf32>
    %40 = arith.subf %25, %39 : vector<8x128xf32>
    %cst_15 = arith.constant 9.99999974E-6 : f32
    %41 = vector.broadcast %cst_15 : f32 to vector<1x128xf32>
    %42 = arith.addf %38, %41 : vector<1x128xf32>
    %43 = math.rsqrt %42 : vector<1x128xf32>
    %44 = vector.broadcast %43 : vector<1x128xf32> to vector<8x128xf32>
    %45 = arith.mulf %40, %44 : vector<8x128xf32>
    %cst_16 = arith.constant 0.000000e+00 : f32
    %46 = vector.broadcast %cst_16 : f32 to vector<8x128xf32>
    %47 = arith.maximumf %45, %46 : vector<8x128xf32>
    %c0_17 = arith.constant 0 : index
    %c0_18 = arith.constant 0 : index
    %c0_19 = arith.constant 0 : index
    %c0_20 = arith.constant 0 : index
    %48 = vector.load %arg2[%c0_17, %c0_18, %c0_19, %c0_20] : memref<2x2x128x128xbf16, #tpu.memory_space<vmem>>, vector<1x1x128x128xbf16>
    %49 = vector.shape_cast %48 : vector<1x1x128x128xbf16> to vector<128x128xbf16>
    %50 = arith.truncf %47 : vector<8x128xf32> to vector<8x128xbf16>
    %cst_21 = arith.constant dense<0.000000e+00> : vector<8x128xf32>
    %51 = tpu.matmul %50, %49, %cst_21 {dimension_numbers = #tpu.dot_dimension_numbers<[1], [0], [0], [1], [0, 0, 1, 1], [], []>} : vector<8x128xbf16>, vector<128x128xbf16>, vector<8x128xf32> -> vector<8x128xf32>
    %cst_22 = arith.constant dense<0.000000e+00> : vector<128xf32>
    %52 = vector.multi_reduction <add>, %51, %cst_22 [0] : vector<8x128xf32> to vector<128xf32>
    %53 = vector.shape_cast %52 : vector<128xf32> to vector<1x128xf32>
    %cst_23 = arith.constant 8.000000e+00 : f32
    %54 = vector.broadcast %cst_23 : f32 to vector<1x128xf32>
    %55 = arith.divf %53, %54 : vector<1x128xf32>
    %56 = arith.mulf %51, %51 : vector<8x128xf32>
    %cst_24 = arith.constant dense<0.000000e+00> : vector<128xf32>
    %57 = vector.multi_reduction <add>, %56, %cst_24 [0] : vector<8x128xf32> to vector<128xf32>
    %58 = vector.shape_cast %57 : vector<128xf32> to vector<1x128xf32>
    %cst_25 = arith.constant 8.000000e+00 : f32
    %59 = vector.broadcast %cst_25 : f32 to vector<1x128xf32>
    %60 = arith.divf %58, %59 : vector<1x128xf32>
    %61 = arith.mulf %55, %55 : vector<1x128xf32>
    %62 = arith.subf %60, %61 : vector<1x128xf32>
    %cst_26 = arith.constant 0.000000e+00 : f32
    %63 = vector.broadcast %cst_26 : f32 to vector<1x128xf32>
    %64 = arith.maximumf %62, %63 : vector<1x128xf32>
    %65 = vector.broadcast %55 : vector<1x128xf32> to vector<8x128xf32>
    %66 = arith.subf %51, %65 : vector<8x128xf32>
    %cst_27 = arith.constant 9.99999974E-6 : f32
    %67 = vector.broadcast %cst_27 : f32 to vector<1x128xf32>
    %68 = arith.addf %64, %67 : vector<1x128xf32>
    %69 = math.rsqrt %68 : vector<1x128xf32>
    %70 = vector.broadcast %69 : vector<1x128xf32> to vector<8x128xf32>
    %71 = arith.mulf %66, %70 : vector<8x128xf32>
    %cst_28 = arith.constant 0.000000e+00 : f32
    %72 = vector.broadcast %cst_28 : f32 to vector<8x128xf32>
    %73 = arith.maximumf %71, %72 : vector<8x128xf32>
    %c0_29 = arith.constant 0 : index
    %c1 = arith.constant 1 : index
    %c0_30 = arith.constant 0 : index
    %c0_31 = arith.constant 0 : index
    %74 = vector.load %arg2[%c0_29, %c1, %c0_30, %c0_31] : memref<2x2x128x128xbf16, #tpu.memory_space<vmem>>, vector<1x1x128x128xbf16>
    %75 = vector.shape_cast %74 : vector<1x1x128x128xbf16> to vector<128x128xbf16>
    %76 = arith.truncf %73 : vector<8x128xf32> to vector<8x128xbf16>
    %cst_32 = arith.constant dense<0.000000e+00> : vector<8x128xf32>
    %77 = tpu.matmul %76, %75, %cst_32 {dimension_numbers = #tpu.dot_dimension_numbers<[1], [0], [0], [1], [0, 0, 1, 1], [], []>} : vector<8x128xbf16>, vector<128x128xbf16>, vector<8x128xf32> -> vector<8x128xf32>
    %c0_33 = arith.constant 0 : index
    %c0_34 = arith.constant 0 : index
    %c0_35 = arith.constant 0 : index
    %78 = vector.load %arg3[%c0_33, %c0_34, %c0_35] : memref<2x1x128xf32, #tpu.memory_space<vmem>>, vector<1x1x128xf32>
    %79 = vector.shape_cast %78 : vector<1x1x128xf32> to vector<1x128xf32>
    %80 = vector.broadcast %79 : vector<1x128xf32> to vector<8x128xf32>
    %81 = arith.addf %77, %80 : vector<8x128xf32>
    %82 = arith.addf %81, %25 : vector<8x128xf32>
    %cst_36 = arith.constant dense<0.000000e+00> : vector<128xf32>
    %83 = vector.multi_reduction <add>, %82, %cst_36 [0] : vector<8x128xf32> to vector<128xf32>
    %84 = vector.shape_cast %83 : vector<128xf32> to vector<1x128xf32>
    %cst_37 = arith.constant 8.000000e+00 : f32
    %85 = vector.broadcast %cst_37 : f32 to vector<1x128xf32>
    %86 = arith.divf %84, %85 : vector<1x128xf32>
    %87 = arith.mulf %82, %82 : vector<8x128xf32>
    %cst_38 = arith.constant dense<0.000000e+00> : vector<128xf32>
    %88 = vector.multi_reduction <add>, %87, %cst_38 [0] : vector<8x128xf32> to vector<128xf32>
    %89 = vector.shape_cast %88 : vector<128xf32> to vector<1x128xf32>
    %cst_39 = arith.constant 8.000000e+00 : f32
    %90 = vector.broadcast %cst_39 : f32 to vector<1x128xf32>
    %91 = arith.divf %89, %90 : vector<1x128xf32>
    %92 = arith.mulf %86, %86 : vector<1x128xf32>
    %93 = arith.subf %91, %92 : vector<1x128xf32>
    %cst_40 = arith.constant 0.000000e+00 : f32
    %94 = vector.broadcast %cst_40 : f32 to vector<1x128xf32>
    %95 = arith.maximumf %93, %94 : vector<1x128xf32>
    %96 = vector.broadcast %86 : vector<1x128xf32> to vector<8x128xf32>
    %97 = arith.subf %82, %96 : vector<8x128xf32>
    %cst_41 = arith.constant 9.99999974E-6 : f32
    %98 = vector.broadcast %cst_41 : f32 to vector<1x128xf32>
    %99 = arith.addf %95, %98 : vector<1x128xf32>
    %100 = math.rsqrt %99 : vector<1x128xf32>
    %101 = vector.broadcast %100 : vector<1x128xf32> to vector<8x128xf32>
    %102 = arith.mulf %97, %101 : vector<8x128xf32>
    %cst_42 = arith.constant 0.000000e+00 : f32
    %103 = vector.broadcast %cst_42 : f32 to vector<8x128xf32>
    %104 = arith.maximumf %102, %103 : vector<8x128xf32>
    %c1_43 = arith.constant 1 : index
    %c0_44 = arith.constant 0 : index
    %c0_45 = arith.constant 0 : index
    %c0_46 = arith.constant 0 : index
    %105 = vector.load %arg2[%c1_43, %c0_44, %c0_45, %c0_46] : memref<2x2x128x128xbf16, #tpu.memory_space<vmem>>, vector<1x1x128x128xbf16>
    %106 = vector.shape_cast %105 : vector<1x1x128x128xbf16> to vector<128x128xbf16>
    %107 = arith.truncf %104 : vector<8x128xf32> to vector<8x128xbf16>
    %cst_47 = arith.constant dense<0.000000e+00> : vector<8x128xf32>
    %108 = tpu.matmul %107, %106, %cst_47 {dimension_numbers = #tpu.dot_dimension_numbers<[1], [0], [0], [1], [0, 0, 1, 1], [], []>} : vector<8x128xbf16>, vector<128x128xbf16>, vector<8x128xf32> -> vector<8x128xf32>
    %cst_48 = arith.constant dense<0.000000e+00> : vector<128xf32>
    %109 = vector.multi_reduction <add>, %108, %cst_48 [0] : vector<8x128xf32> to vector<128xf32>
    %110 = vector.shape_cast %109 : vector<128xf32> to vector<1x128xf32>
    %cst_49 = arith.constant 8.000000e+00 : f32
    %111 = vector.broadcast %cst_49 : f32 to vector<1x128xf32>
    %112 = arith.divf %110, %111 : vector<1x128xf32>
    %113 = arith.mulf %108, %108 : vector<8x128xf32>
    %cst_50 = arith.constant dense<0.000000e+00> : vector<128xf32>
    %114 = vector.multi_reduction <add>, %113, %cst_50 [0] : vector<8x128xf32> to vector<128xf32>
    %115 = vector.shape_cast %114 : vector<128xf32> to vector<1x128xf32>
    %cst_51 = arith.constant 8.000000e+00 : f32
    %116 = vector.broadcast %cst_51 : f32 to vector<1x128xf32>
    %117 = arith.divf %115, %116 : vector<1x128xf32>
    %118 = arith.mulf %112, %112 : vector<1x128xf32>
    %119 = arith.subf %117, %118 : vector<1x128xf32>
    %cst_52 = arith.constant 0.000000e+00 : f32
    %120 = vector.broadcast %cst_52 : f32 to vector<1x128xf32>
    %121 = arith.maximumf %119, %120 : vector<1x128xf32>
    %122 = vector.broadcast %112 : vector<1x128xf32> to vector<8x128xf32>
    %123 = arith.subf %108, %122 : vector<8x128xf32>
    %cst_53 = arith.constant 9.99999974E-6 : f32
    %124 = vector.broadcast %cst_53 : f32 to vector<1x128xf32>
    %125 = arith.addf %121, %124 : vector<1x128xf32>
    %126 = math.rsqrt %125 : vector<1x128xf32>
    %127 = vector.broadcast %126 : vector<1x128xf32> to vector<8x128xf32>
    %128 = arith.mulf %123, %127 : vector<8x128xf32>
    %cst_54 = arith.constant 0.000000e+00 : f32
    %129 = vector.broadcast %cst_54 : f32 to vector<8x128xf32>
    %130 = arith.maximumf %128, %129 : vector<8x128xf32>
    %c1_55 = arith.constant 1 : index
    %c1_56 = arith.constant 1 : index
    %c0_57 = arith.constant 0 : index
    %c0_58 = arith.constant 0 : index
    %131 = vector.load %arg2[%c1_55, %c1_56, %c0_57, %c0_58] : memref<2x2x128x128xbf16, #tpu.memory_space<vmem>>, vector<1x1x128x128xbf16>
    %132 = vector.shape_cast %131 : vector<1x1x128x128xbf16> to vector<128x128xbf16>
    %133 = arith.truncf %130 : vector<8x128xf32> to vector<8x128xbf16>
    %cst_59 = arith.constant dense<0.000000e+00> : vector<8x128xf32>
    %134 = tpu.matmul %133, %132, %cst_59 {dimension_numbers = #tpu.dot_dimension_numbers<[1], [0], [0], [1], [0, 0, 1, 1], [], []>} : vector<8x128xbf16>, vector<128x128xbf16>, vector<8x128xf32> -> vector<8x128xf32>
    %c1_60 = arith.constant 1 : index
    %c0_61 = arith.constant 0 : index
    %c0_62 = arith.constant 0 : index
    %135 = vector.load %arg3[%c1_60, %c0_61, %c0_62] : memref<2x1x128xf32, #tpu.memory_space<vmem>>, vector<1x1x128xf32>
    %136 = vector.shape_cast %135 : vector<1x1x128xf32> to vector<1x128xf32>
    %137 = vector.broadcast %136 : vector<1x128xf32> to vector<8x128xf32>
    %138 = arith.addf %134, %137 : vector<8x128xf32>
    %139 = arith.addf %138, %82 : vector<8x128xf32>
    %c0_63 = arith.constant 0 : index
    %c0_64 = arith.constant 0 : index
    %140 = vector.load %arg4[%c0_63, %c0_64] : memref<128x128xbf16, #tpu.memory_space<vmem>>, vector<128x128xbf16>
    %141 = arith.truncf %139 : vector<8x128xf32> to vector<8x128xbf16>
    %cst_65 = arith.constant dense<0.000000e+00> : vector<8x128xf32>
    %142 = tpu.matmul %141, %140, %cst_65 {dimension_numbers = #tpu.dot_dimension_numbers<[1], [0], [0], [1], [0, 0, 1, 1], [], []>} : vector<8x128xbf16>, vector<128x128xbf16>, vector<8x128xf32> -> vector<8x128xf32>
    %c0_66 = arith.constant 0 : index
    %c0_67 = arith.constant 0 : index
    %143 = vector.load %arg5[%c0_66, %c0_67] : memref<1x128xf32, #tpu.memory_space<vmem>>, vector<1x128xf32>
    %144 = vector.broadcast %143 : vector<1x128xf32> to vector<8x128xf32>
    %145 = arith.addf %142, %144 : vector<8x128xf32>
    %c0_68 = arith.constant 0 : index
    %c0_69 = arith.constant 0 : index
    %146 = vector.load %arg6[%c0_68, %c0_69] : memref<8x128xf32, #tpu.memory_space<vmem>>, vector<8x128xf32>
    tpu.vector_store %arg6[%c0_68, %c0_69], %145 {strides = array<i32>} : memref<8x128xf32, #tpu.memory_space<vmem>>, vector<8x128xf32>,
    return
  }
}

</mosaic_0001>

<llo_original>
// kernel: tpu_custom_call.1
$region0: #{tpu_custom_call.1}
  #allocation0 [shape = 'u32[]', space=smem, size = 0x4, offset = 0x4, fixed_abs, tag = 'smem constant byte address 0x4 - core index']
  #allocation1 [shape = 'u32[144,128]{1,0:T(1,128)}', space=vmem, size = 0x12000, scoped, tag = 'internal scratch']
  %s0 = inlined_call_operand.hbm [shape: f32[8,128], index: 0, kind: input, shape index: {}]
  %s1 = inlined_call_operand.hbm [shape: bf16[128,128], index: 1, kind: input, shape index: {}]
  %s2 = inlined_call_operand.hbm [shape: bf16[2,2,128,128], index: 2, kind: input, shape index: {}]
  %s3 = inlined_call_operand.vmem [shape: f32[2,1,128], index: 3, kind: input, shape index: {}]
  %s4 = inlined_call_operand.hbm [shape: bf16[128,128], index: 4, kind: input, shape index: {}]
  %s5 = inlined_call_operand.vmem [shape: f32[1,128], index: 5, kind: input, shape index: {}]
  %s6 = inlined_call_operand.hbm [shape: f32[8,128], index: 6, kind: output, shape index: {}]
  %s7 = sld [smem:[#allocation0]]
  $region50: #{tpu_custom_call.1} parent=0
    _
  %s9 = ssub.s32 1, %s7
  %s10 = scalar_select 0, %s9, %s7
  $region1: #{tpu_custom_call.1} parent=0
    #allocation2 [shape = 'u8[4096]{0}', space=vmem, size = 0x1000, scoped, tag = 'input window, operand 0, single buffered']
    #allocation3 [shape = 's32[1]{0}', space=sflag, size = 0x4, scoped, tag = 'scoped memory for tpu_custom_call.1']
    #allocation4 [shape = 's32[1]{0}', space=sflag, size = 0x4, scoped, tag = 'scoped memory for tpu_custom_call.1']
    #allocation5 [shape = 'u8[32768]{0}', space=vmem, size = 0x8000, scoped, tag = 'input window, operand 1, single buffered']
    #allocation6 [shape = 's32[1]{0}', space=sflag, size = 0x4, scoped, tag = 'scoped memory for tpu_custom_call.1']
    #allocation7 [shape = 'u8[131072]{0}', space=vmem, size = 0x20000, scoped, tag = 'input window, operand 2, single buffered']
    #allocation8 [shape = 'u8[32768]{0}', space=vmem, size = 0x8000, scoped, tag = 'input window, operand 4, single buffered']
    #allocation9 [shape = 's32[1]{0}', space=sflag, size = 0x4, scoped, tag = 'scoped memory for tpu_custom_call.1']
    #allocation10 [shape = 'u8[4096]{0}', space=vmem, size = 0x1000, scoped, tag = 'output window, operand 0, single buffered']
    %11 = vsyncpa [#allocation3], 0
    %12 = vsyncpa [#allocation6], 0
    %13 = vsyncpa [#allocation9], 0
    %14 = vsyncpa [#allocation4], 0
    // Predicated region
    $region2: #{tpu_custom_call.1} parent=1 // pred_check
      _
    $region3: #{tpu_custom_call.1} parent=1 // pred_check_branch
      %16 = sbr.rel (0) target = $region5
    $region4: #{tpu_custom_call.1} parent=1 // pred_region
      %s18 = ssub.s32 128, 128
      %19 = vsyncadd [#allocation3], %s18
      %s21 = sshll.u32 [#allocation2], 4
      %s22 = int_to_ptr.vmem [resolvable:$true] %s21
      %24 = dma.hbm_to_vmem [thread:$0]  %s0, 128, %s22, [#allocation3]
    $region5: #{tpu_custom_call.1} parent=1 // pred_fallthru
      _
    // Predicated region
    $region6: #{tpu_custom_call.1} parent=1 // pred_check
      _
    $region7: #{tpu_custom_call.1} parent=1 // pred_check_branch
      %26 = sbr.rel (0) target = $region9
    $region8: #{tpu_custom_call.1} parent=1 // pred_region
      %s28 = ssub.s32 1024, 1024
      %29 = vsyncadd [#allocation6], %s28
      %s30 = sshll.u32 [#allocation5], 4
      %s31 = int_to_ptr.vmem [resolvable:$true] %s30
      %36 = dma.hbm_to_vmem [thread:$0]  %s1, 1024, %s31, [#allocation6], 64, 64, 4
    $region9: #{tpu_custom_call.1} parent=1 // pred_fallthru
      _
    // Predicated region
    $region10: #{tpu_custom_call.1} parent=1 // pred_check
      _
    $region11: #{tpu_custom_call.1} parent=1 // pred_check_branch
      %38 = sbr.rel (0) target = $region13
    $region12: #{tpu_custom_call.1} parent=1 // pred_region
      %s40 = ssub.s32 4096, 4096
      %41 = vsyncadd [#allocation6], %s40
      %s42 = sshll.u32 [#allocation7], 4
      %s43 = int_to_ptr.vmem [resolvable:$true] %s42
      %48 = dma.hbm_to_vmem [thread:$0]  %s2, 4096, %s43, [#allocation6], 64, 64, 4
    $region13: #{tpu_custom_call.1} parent=1 // pred_fallthru
      _
    // Predicated region
    $region14: #{tpu_custom_call.1} parent=1 // pred_check
      _
    $region15: #{tpu_custom_call.1} parent=1 // pred_check_branch
      %50 = sbr.rel (0) target = $region17
    $region16: #{tpu_custom_call.1} parent=1 // pred_region
      _
    $region17: #{tpu_custom_call.1} parent=1 // pred_fallthru
      _
    // Predicated region
    $region18: #{tpu_custom_call.1} parent=1 // pred_check
      _
    $region19: #{tpu_custom_call.1} parent=1 // pred_check_branch
      %52 = sbr.rel (0) target = $region21
    $region20: #{tpu_custom_call.1} parent=1 // pred_region
      %s54 = ssub.s32 1024, 1024
      %55 = vsyncadd [#allocation9], %s54
      %s56 = sshll.u32 [#allocation8], 4
      %s57 = int_to_ptr.vmem [resolvable:$true] %s56
      %62 = dma.hbm_to_vmem [thread:$0]  %s4, 1024, %s57, [#allocation9], 64, 64, 4
    $region21: #{tpu_custom_call.1} parent=1 // pred_fallthru
      _
    // Predicated region
    $region22: #{tpu_custom_call.1} parent=1 // pred_check
      _
    $region23: #{tpu_custom_call.1} parent=1 // pred_check_branch
      %64 = sbr.rel (0) target = $region25
    $region24: #{tpu_custom_call.1} parent=1 // pred_region
      _
    $region25: #{tpu_custom_call.1} parent=1 // pred_fallthru
      _
    // Predicated region
    $region26: #{tpu_custom_call.1} parent=1 // pred_check
      _
    $region27: #{tpu_custom_call.1} parent=1 // pred_check_branch
      %66 = sbr.rel (0) target = $region29
    $region28: #{tpu_custom_call.1} parent=1 // pred_region
      %67 = dma.done [#allocation3], 128
    $region29: #{tpu_custom_call.1} parent=1 // pred_fallthru
      _
    // Predicated region
    $region30: #{tpu_custom_call.1} parent=1 // pred_check
      _
    $region31: #{tpu_custom_call.1} parent=1 // pred_check_branch
      %69 = sbr.rel (0) target = $region33
    $region32: #{tpu_custom_call.1} parent=1 // pred_region
      %70 = dma.done [#allocation6], 1024
    $region33: #{tpu_custom_call.1} parent=1 // pred_fallthru
      _
    // Predicated region
    $region34: #{tpu_custom_call.1} parent=1 // pred_check
      _
    $region35: #{tpu_custom_call.1} parent=1 // pred_check_branch
      %72 = sbr.rel (0) target = $region37
    $region36: #{tpu_custom_call.1} parent=1 // pred_region
      %73 = dma.done [#allocation6], 4096
    $region37: #{tpu_custom_call.1} parent=1 // pred_fallthru
      _
    // Predicated region
    $region38: #{tpu_custom_call.1} parent=1 // pred_check
      _
    $region39: #{tpu_custom_call.1} parent=1 // pred_check_branch
      %75 = sbr.rel (0) target = $region41
    $region40: #{tpu_custom_call.1} parent=1 // pred_region
      %76 = dma.done [#allocation9], 1024
    $region41: #{tpu_custom_call.1} parent=1 // pred_fallthru
      _
    %v78 = vld [vmem:[#allocation2] sm:$0xff]
    %v79 = vld [vmem:[#allocation5] sm:$0xf]
    %v80 = vld [vmem:[#allocation5 + $0x4] sm:$0xf]
    %v81 = vld [vmem:[#allocation5 + $0x8] sm:$0xf]
    %v82 = vld [vmem:[#allocation5 + $0xc] sm:$0xf]
    %v83 = vld [vmem:[#allocation5 + $0x10] sm:$0xf]
    %v84 = vld [vmem:[#allocation5 + $0x14] sm:$0xf]
    %v85 = vld [vmem:[#allocation5 + $0x18] sm:$0xf]
    %v86 = vld [vmem:[#allocation5 + $0x1c] sm:$0xf]
    %v87 = vld [vmem:[#allocation5 + $0x20] sm:$0xf]
    %v88 = vld [vmem:[#allocation5 + $0x24] sm:$0xf]
    %v89 = vld [vmem:[#allocation5 + $0x28] sm:$0xf]
    %v90 = vld [vmem:[#allocation5 + $0x2c] sm:$0xf]
    %v91 = vld [vmem:[#allocation5 + $0x30] sm:$0xf]
    %v92 = vld [vmem:[#allocation5 + $0x34] sm:$0xf]
    %v93 = vld [vmem:[#allocation5 + $0x38] sm:$0xf]
    %v94 = vld [vmem:[#allocation5 + $0x3c] sm:$0xf]
    %v95 = vpack.c.bf16 %v78, %v78
    %v112 = vunpack.c.l.b16 %v79
    %v113 = vunpack.c.l.b16 %v80
    %v114 = vunpack.c.l.b16 %v81
    %v115 = vunpack.c.l.b16 %v82
    %v116 = vunpack.c.l.b16 %v83
    %v117 = vunpack.c.l.b16 %v84
    %v118 = vunpack.c.l.b16 %v85
    %v119 = vunpack.c.l.b16 %v86
    %v120 = vunpack.c.l.b16 %v87
    %v121 = vunpack.c.l.b16 %v88
    %v122 = vunpack.c.l.b16 %v89
    %v123 = vunpack.c.l.b16 %v90
    %v124 = vunpack.c.l.b16 %v91
    %v125 = vunpack.c.l.b16 %v92
    %v126 = vunpack.c.l.b16 %v93
    %v127 = vunpack.c.l.b16 %v94
    %v128 = vpack.c.b16 %v113, %v112
    %v129 = vpack.c.b16 %v115, %v114
    %v130 = vpack.c.b16 %v117, %v116
    %v131 = vpack.c.b16 %v119, %v118
    %v132 = vpack.c.b16 %v121, %v120
    %v133 = vpack.c.b16 %v123, %v122
    %v134 = vpack.c.b16 %v125, %v124
    %v135 = vpack.c.b16 %v127, %v126
    %144 = vmatprep.subr.bf16.mxu0 0
    %145 = vmatpush1.bf16.msra.mxu0 %v128
    %146 = vmatprep.subr.bf16.mxu0 0
    %147 = vmatpush1.bf16.msra.mxu0 %v129
    %148 = vmatprep.subr.bf16.mxu0 0
    %149 = vmatpush1.bf16.msra.mxu0 %v130
    %150 = vmatprep.subr.bf16.mxu0 0
    %151 = vmatpush1.bf16.msra.mxu0 %v131
    %152 = vmatprep.subr.bf16.mxu0 0
    %153 = vmatpush1.bf16.msra.mxu0 %v132
    %154 = vmatprep.subr.bf16.mxu0 0
    %155 = vmatpush1.bf16.msra.mxu0 %v133
    %156 = vmatprep.subr.bf16.mxu0 0
    %157 = vmatpush1.bf16.msra.mxu0 %v134
    %158 = vmatprep.subr.bf16.mxu0 0
    %159 = vmatpush1.bf16.msra.mxu0 %v135
    %160 = vmatprep.subr.bf16.mxu0 0
    %161 = vmatpush1.bf16.msra.mxu0 0
    %162 = vmatprep.subr.bf16.mxu0 0
    %163 = vmatpush1.bf16.msra.mxu0 0
    %164 = vmatprep.subr.bf16.mxu0 0
    %165 = vmatpush1.bf16.msra.mxu0 0
    %166 = vmatprep.subr.bf16.mxu0 0
    %167 = vmatpush1.bf16.msra.mxu0 0
    %168 = vmatprep.subr.bf16.mxu0 0
    %169 = vmatpush1.bf16.msra.mxu0 0
    %170 = vmatprep.subr.bf16.mxu0 0
    %171 = vmatpush1.bf16.msra.mxu0 0
    %172 = vmatprep.subr.bf16.mxu0 0
    %173 = vmatpush1.bf16.msra.mxu0 0
    %174 = vmatprep.subr.bf16.mxu0 0
    %175 = vmatpush1.bf16.msra.mxu0 0
    %176 = vmatprep.mubr.bf16.mxu0 0
    %177 = vmatmul.mubr.bf16.gmra.mrb[0].mxu0 %v95
    %v178 = vpop.f32.mrb[0].mxu0
    %v179 = vadd.f32 0.0, %v178
    %v180 = vpop.f32.mrb[0].mxu0
    %v181 = vpop.f32.mrb[0].mxu0
    %v182 = vpop.f32.mrb[0].mxu0
    %183 = vdwg.mxu0
    %v184 = vrot.slane %v179, 4
    %v185 = vadd.f32 %v179, %v184
    %v186 = vrot.slane %v185, 2
    %v187 = vadd.f32 %v185, %v186
    %v188 = vrot.slane %v187, 1
    %v189 = vadd.f32 %v187, %v188
    %v190 = vrcp.pop 8.0
    %v191 = vmul.f32 %v189, %v190
    %v192 = vmul.f32 %v179, %v179
    %v193 = vrot.slane %v192, 4
    %v194 = vadd.f32 %v192, %v193
    %v195 = vrot.slane %v194, 2
    %v196 = vadd.f32 %v194, %v195
    %v197 = vrot.slane %v196, 1
    %v198 = vadd.f32 %v196, %v197
    %v199 = vmul.f32 %v198, %v190
    %v200 = vmul.f32 %v191, %v191
    %v201 = vsub.f32 %v199, %v200
    %v202 = vmax.f32 %v201, 0.0
    %v203 = vsub.f32 %v179, %v191
    %v204 = vadd.f32 %v202, 1e-05
    %v205 = vrsqrt.pop %v204
    %v206 = vmul.f32 %v203, %v205
    %v207 = vmax.f32 %v206, 0.0
    %v208 = vrot.slane %v207, 4
    %v209 = vadd.f32 %v207, %v208
    %v210 = vrot.slane %v209, 2
    %v211 = vadd.f32 %v209, %v210
    %v212 = vrot.slane %v211, 1
    %v213 = vadd.f32 %v211, %v212
    %v214 = vmul.f32 %v213, %v190
    %v215 = vmul.f32 %v207, %v207
    %v216 = vrot.slane %v215, 4
    %v217 = vadd.f32 %v215, %v216
    %v218 = vrot.slane %v217, 2
    %v219 = vadd.f32 %v217, %v218
    %v220 = vrot.slane %v219, 1
    %v221 = vadd.f32 %v219, %v220
    %v222 = vmul.f32 %v221, %v190
    %v223 = vmul.f32 %v214, %v214
    %v224 = vsub.f32 %v222, %v223
    %v225 = vmax.f32 %v224, 0.0
    %v226 = vsub.f32 %v207, %v214
    %v227 = vadd.f32 %v225, 1e-05
    %v228 = vrsqrt.pop %v227
    %v229 = vmul.f32 %v226, %v228
    %v230 = vmax.f32 %v229, 0.0
    %v231 = vld [vmem:[#allocation7] sm:$0xf]
    %v232 = vld [vmem:[#allocation7 + $0x4] sm:$0xf]
    %v233 = vld [vmem:[#allocation7 + $0x8] sm:$0xf]
    %v234 = vld [vmem:[#allocation7 + $0xc] sm:$0xf]
    %v235 = vld [vmem:[#allocation7 + $0x10] sm:$0xf]
    %v236 = vld [vmem:[#allocation7 + $0x14] sm:$0xf]
    %v237 = vld [vmem:[#allocation7 + $0x18] sm:$0xf]
    %v238 = vld [vmem:[#allocation7 + $0x1c] sm:$0xf]
    %v239 = vld [vmem:[#allocation7 + $0x20] sm:$0xf]
    %v240 = vld [vmem:[#allocation7 + $0x24] sm:$0xf]
    %v241 = vld [vmem:[#allocation7 + $0x28] sm:$0xf]
    %v242 = vld [vmem:[#allocation7 + $0x2c] sm:$0xf]
    %v243 = vld [vmem:[#allocation7 + $0x30] sm:$0xf]
    %v244 = vld [vmem:[#allocation7 + $0x34] sm:$0xf]
    %v245 = vld [vmem:[#allocation7 + $0x38] sm:$0xf]
    %v246 = vld [vmem:[#allocation7 + $0x3c] sm:$0xf]
    %v247 = vpack.c.bf16 %v230, %v230
    %v264 = vunpack.c.l.b16 %v231
    %v265 = vunpack.c.l.b16 %v232
    %v266 = vunpack.c.l.b16 %v233
    %v267 = vunpack.c.l.b16 %v234
    %v268 = vunpack.c.l.b16 %v235
    %v269 = vunpack.c.l.b16 %v236
    %v270 = vunpack.c.l.b16 %v237
    %v271 = vunpack.c.l.b16 %v238
    %v272 = vunpack.c.l.b16 %v239
    %v273 = vunpack.c.l.b16 %v240
    %v274 = vunpack.c.l.b16 %v241
    %v275 = vunpack.c.l.b16 %v242
    %v276 = vunpack.c.l.b16 %v243
    %v277 = vunpack.c.l.b16 %v244
    %v278 = vunpack.c.l.b16 %v245
    %v279 = vunpack.c.l.b16 %v246
    %v280 = vpack.c.b16 %v265, %v264
    %v281 = vpack.c.b16 %v267, %v266
    %v282 = vpack.c.b16 %v269, %v268
    %v283 = vpack.c.b16 %v271, %v270
    %v284 = vpack.c.b16 %v273, %v272
    %v285 = vpack.c.b16 %v275, %v274
    %v286 = vpack.c.b16 %v277, %v276
    %v287 = vpack.c.b16 %v279, %v278
    %296 = vmatprep.subr.bf16.mxu0 0
    %297 = vmatpush1.bf16.msra.mxu0 %v280
    %298 = vmatprep.subr.bf16.mxu0 0
    %299 = vmatpush1.bf16.msra.mxu0 %v281
    %300 = vmatprep.subr.bf16.mxu0 0
    %301 = vmatpush1.bf16.msra.mxu0 %v282
    %302 = vmatprep.subr.bf16.mxu0 0
    %303 = vmatpush1.bf16.msra.mxu0 %v283
    %304 = vmatprep.subr.bf16.mxu0 0
    %305 = vmatpush1.bf16.msra.mxu0 %v284
    %306 = vmatprep.subr.bf16.mxu0 0
    %307 = vmatpush1.bf16.msra.mxu0 %v285
    %308 = vmatprep.subr.bf16.mxu0 0
    %309 = vmatpush1.bf16.msra.mxu0 %v286
    %310 = vmatprep.subr.bf16.mxu0 0
    %311 = vmatpush1.bf16.msra.mxu0 %v287
    %312 = vmatprep.subr.bf16.mxu0 0
    %313 = vmatpush1.bf16.msra.mxu0 0
    %314 = vmatprep.subr.bf16.mxu0 0
    %315 = vmatpush1.bf16.msra.mxu0 0
    %316 = vmatprep.subr.bf16.mxu0 0
    %317 = vmatpush1.bf16.msra.mxu0 0
    %318 = vmatprep.subr.bf16.mxu0 0
    %319 = vmatpush1.bf16.msra.mxu0 0
    %320 = vmatprep.subr.bf16.mxu0 0
    %321 = vmatpush1.bf16.msra.mxu0 0
    %322 = vmatprep.subr.bf16.mxu0 0
    %323 = vmatpush1.bf16.msra.mxu0 0
    %324 = vmatprep.subr.bf16.mxu0 0
    %325 = vmatpush1.bf16.msra.mxu0 0
    %326 = vmatprep.subr.bf16.mxu0 0
    %327 = vmatpush1.bf16.msra.mxu0 0
    %328 = vmatprep.mubr.bf16.mxu0 0
    %329 = vmatmul.mubr.bf16.gmra.mrb[0].mxu0 %v247
    %v330 = vpop.f32.mrb[0].mxu0
    %v331 = vadd.f32 0.0, %v330
    %v332 = vpop.f32.mrb[0].mxu0
    %v333 = vpop.f32.mrb[0].mxu0
    %v334 = vpop.f32.mrb[0].mxu0
    %335 = vdwg.mxu0
    %v336 = vrot.slane %v331, 4
    %v337 = vadd.f32 %v331, %v336
    %v338 = vrot.slane %v337, 2
    %v339 = vadd.f32 %v337, %v338
    %v340 = vrot.slane %v339, 1
    %v341 = vadd.f32 %v339, %v340
    %v342 = vmul.f32 %v341, %v190
    %v343 = vmul.f32 %v331, %v331
    %v344 = vrot.slane %v343, 4
    %v345 = vadd.f32 %v343, %v344
    %v346 = vrot.slane %v345, 2
    %v347 = vadd.f32 %v345, %v346
    %v348 = vrot.slane %v347, 1
    %v349 = vadd.f32 %v347, %v348
    %v350 = vmul.f32 %v349, %v190
    %v351 = vmul.f32 %v342, %v342
    %v352 = vsub.f32 %v350, %v351
    %v353 = vmax.f32 %v352, 0.0
    %v354 = vsub.f32 %v331, %v342
    %v355 = vadd.f32 %v353, 1e-05
    %v356 = vrsqrt.pop %v355
    %v357 = vmul.f32 %v354, %v356
    %v358 = vmax.f32 %v357, 0.0
    %s359 = scalar_lea.vmem [#allocation7], 64
    %v360 = vld [vmem:[%s359] sm:$0xf]
    %v361 = vld [vmem:[%s359 + $0x4] sm:$0xf]
    %v362 = vld [vmem:[%s359 + $0x8] sm:$0xf]
    %v363 = vld [vmem:[%s359 + $0xc] sm:$0xf]
    %v364 = vld [vmem:[%s359 + $0x10] sm:$0xf]
    %v365 = vld [vmem:[%s359 + $0x14] sm:$0xf]
    %v366 = vld [vmem:[%s359 + $0x18] sm:$0xf]
    %v367 = vld [vmem:[%s359 + $0x1c] sm:$0xf]
    %v368 = vld [vmem:[%s359 + $0x20] sm:$0xf]
    %v369 = vld [vmem:[%s359 + $0x24] sm:$0xf]
    %v370 = vld [vmem:[%s359 + $0x28] sm:$0xf]
    %v371 = vld [vmem:[%s359 + $0x2c] sm:$0xf]
    %v372 = vld [vmem:[%s359 + $0x30] sm:$0xf]
    %v373 = vld [vmem:[%s359 + $0x34] sm:$0xf]
    %v374 = vld [vmem:[%s359 + $0x38] sm:$0xf]
    %v375 = vld [vmem:[%s359 + $0x3c] sm:$0xf]
    %v376 = vpack.c.bf16 %v358, %v358
    %v377 = vld [vmem:[%s3] sm:$0x1]
    %v379 = vlaneseq
    %v380 = vshrl.u32 %v379, 7
    %v381 = vsub.s32 0, %v380
    %v382 = vrot.slane %v377, %v381
    %v400 = vunpack.c.l.b16 %v360
    %v401 = vunpack.c.l.b16 %v361
    %v402 = vunpack.c.l.b16 %v362
    %v403 = vunpack.c.l.b16 %v363
    %v404 = vunpack.c.l.b16 %v364
    %v405 = vunpack.c.l.b16 %v365
    %v406 = vunpack.c.l.b16 %v366
    %v407 = vunpack.c.l.b16 %v367
    %v408 = vunpack.c.l.b16 %v368
    %v409 = vunpack.c.l.b16 %v369
    %v410 = vunpack.c.l.b16 %v370
    %v411 = vunpack.c.l.b16 %v371
    %v412 = vunpack.c.l.b16 %v372
    %v413 = vunpack.c.l.b16 %v373
    %v414 = vunpack.c.l.b16 %v374
    %v415 = vunpack.c.l.b16 %v375
    %v416 = vpack.c.b16 %v401, %v400
    %v417 = vpack.c.b16 %v403, %v402
    %v418 = vpack.c.b16 %v405, %v404
    %v419 = vpack.c.b16 %v407, %v406
    %v420 = vpack.c.b16 %v409, %v408
    %v421 = vpack.c.b16 %v411, %v410
    %v422 = vpack.c.b16 %v413, %v412
    %v423 = vpack.c.b16 %v415, %v414
    %432 = vmatprep.subr.bf16.mxu0 0
    %433 = vmatpush1.bf16.msra.mxu0 %v416
    %434 = vmatprep.subr.bf16.mxu0 0
    %435 = vmatpush1.bf16.msra.mxu0 %v417
    %436 = vmatprep.subr.bf16.mxu0 0
    %437 = vmatpush1.bf16.msra.mxu0 %v418
    %438 = vmatprep.subr.bf16.mxu0 0
    %439 = vmatpush1.bf16.msra.mxu0 %v419
    %440 = vmatprep.subr.bf16.mxu0 0
    %441 = vmatpush1.bf16.msra.mxu0 %v420
    %442 = vmatprep.subr.bf16.mxu0 0
    %443 = vmatpush1.bf16.msra.mxu0 %v421
    %444 = vmatprep.subr.bf16.mxu0 0
    %445 = vmatpush1.bf16.msra.mxu0 %v422
    %446 = vmatprep.subr.bf16.mxu0 0
    %447 = vmatpush1.bf16.msra.mxu0 %v423
    %448 = vmatprep.subr.bf16.mxu0 0
    %449 = vmatpush1.bf16.msra.mxu0 0
    %450 = vmatprep.subr.bf16.mxu0 0
    %451 = vmatpush1.bf16.msra.mxu0 0
    %452 = vmatprep.subr.bf16.mxu0 0
    %453 = vmatpush1.bf16.msra.mxu0 0
    %454 = vmatprep.subr.bf16.mxu0 0
    %455 = vmatpush1.bf16.msra.mxu0 0
    %456 = vmatprep.subr.bf16.mxu0 0
    %457 = vmatpush1.bf16.msra.mxu0 0
    %458 = vmatprep.subr.bf16.mxu0 0
    %459 = vmatpush1.bf16.msra.mxu0 0
    %460 = vmatprep.subr.bf16.mxu0 0
    %461 = vmatpush1.bf16.msra.mxu0 0
    %462 = vmatprep.subr.bf16.mxu0 0
    %463 = vmatpush1.bf16.msra.mxu0 0
    %464 = vmatprep.mubr.bf16.mxu0 0
    %465 = vmatmul.mubr.bf16.gmra.mrb[0].mxu0 %v376
    %v466 = vpop.f32.mrb[0].mxu0
    %v467 = vadd.f32 %v382, %v466
    %v468 = vpop.f32.mrb[0].mxu0
    %v469 = vpop.f32.mrb[0].mxu0
    %v470 = vpop.f32.mrb[0].mxu0
    %471 = vdwg.mxu0
    %v472 = vadd.f32 %v467, %v207
    %v473 = vrot.slane %v472, 4
    %v474 = vadd.f32 %v472, %v473
    %v475 = vrot.slane %v474, 2
    %v476 = vadd.f32 %v474, %v475
    %v477 = vrot.slane %v476, 1
    %v478 = vadd.f32 %v476, %v477
    %v479 = vmul.f32 %v478, %v190
    %v480 = vmul.f32 %v472, %v472
    %v481 = vrot.slane %v480, 4
    %v482 = vadd.f32 %v480, %v481
    %v483 = vrot.slane %v482, 2
    %v484 = vadd.f32 %v482, %v483
    %v485 = vrot.slane %v484, 1
    %v486 = vadd.f32 %v484, %v485
    %v487 = vmul.f32 %v486, %v190
    %v488 = vmul.f32 %v479, %v479
    %v489 = vsub.f32 %v487, %v488
    %v490 = vmax.f32 %v489, 0.0
    %v491 = vsub.f32 %v472, %v479
    %v492 = vadd.f32 %v490, 1e-05
    %v493 = vrsqrt.pop %v492
    %v494 = vmul.f32 %v491, %v493
    %v495 = vmax.f32 %v494, 0.0
    %s496 = scalar_lea.vmem [#allocation7], 128
    %v497 = vld [vmem:[%s496] sm:$0xf]
    %v498 = vld [vmem:[%s496 + $0x4] sm:$0xf]
    %v499 = vld [vmem:[%s496 + $0x8] sm:$0xf]
    %v500 = vld [vmem:[%s496 + $0xc] sm:$0xf]
    %v501 = vld [vmem:[%s496 + $0x10] sm:$0xf]
    %v502 = vld [vmem:[%s496 + $0x14] sm:$0xf]
    %v503 = vld [vmem:[%s496 + $0x18] sm:$0xf]
    %v504 = vld [vmem:[%s496 + $0x1c] sm:$0xf]
    %v505 = vld [vmem:[%s496 + $0x20] sm:$0xf]
    %v506 = vld [vmem:[%s496 + $0x24] sm:$0xf]
    %v507 = vld [vmem:[%s496 + $0x28] sm:$0xf]
    %v508 = vld [vmem:[%s496 + $0x2c] sm:$0xf]
    %v509 = vld [vmem:[%s496 + $0x30] sm:$0xf]
    %v510 = vld [vmem:[%s496 + $0x34] sm:$0xf]
    %v511 = vld [vmem:[%s496 + $0x38] sm:$0xf]
    %v512 = vld [vmem:[%s496 + $0x3c] sm:$0xf]
    %v513 = vpack.c.bf16 %v495, %v495
    %v530 = vunpack.c.l.b16 %v497
    %v531 = vunpack.c.l.b16 %v498
    %v532 = vunpack.c.l.b16 %v499
    %v533 = vunpack.c.l.b16 %v500
    %v534 = vunpack.c.l.b16 %v501
    %v535 = vunpack.c.l.b16 %v502
    %v536 = vunpack.c.l.b16 %v503
    %v537 = vunpack.c.l.b16 %v504
    %v538 = vunpack.c.l.b16 %v505
    %v539 = vunpack.c.l.b16 %v506
    %v540 = vunpack.c.l.b16 %v507
    %v541 = vunpack.c.l.b16 %v508
    %v542 = vunpack.c.l.b16 %v509
    %v543 = vunpack.c.l.b16 %v510
    %v544 = vunpack.c.l.b16 %v511
    %v545 = vunpack.c.l.b16 %v512
    %v546 = vpack.c.b16 %v531, %v530
    %v547 = vpack.c.b16 %v533, %v532
    %v548 = vpack.c.b16 %v535, %v534
    %v549 = vpack.c.b16 %v537, %v536
    %v550 = vpack.c.b16 %v539, %v538
    %v551 = vpack.c.b16 %v541, %v540
    %v552 = vpack.c.b16 %v543, %v542
    %v553 = vpack.c.b16 %v545, %v544
    %562 = vmatprep.subr.bf16.mxu0 0
    %563 = vmatpush1.bf16.msra.mxu0 %v546
    %564 = vmatprep.subr.bf16.mxu0 0
    %565 = vmatpush1.bf16.msra.mxu0 %v547
    %566 = vmatprep.subr.bf16.mxu0 0
    %567 = vmatpush1.bf16.msra.mxu0 %v548
    %568 = vmatprep.subr.bf16.mxu0 0
    %569 = vmatpush1.bf16.msra.mxu0 %v549
    %570 = vmatprep.subr.bf16.mxu0 0
    %571 = vmatpush1.bf16.msra.mxu0 %v550
    %572 = vmatprep.subr.bf16.mxu0 0
    %573 = vmatpush1.bf16.msra.mxu0 %v551
    %574 = vmatprep.subr.bf16.mxu0 0
    %575 = vmatpush1.bf16.msra.mxu0 %v552
    %576 = vmatprep.subr.bf16.mxu0 0
    %577 = vmatpush1.bf16.msra.mxu0 %v553
    %578 = vmatprep.subr.bf16.mxu0 0
    %579 = vmatpush1.bf16.msra.mxu0 0
    %580 = vmatprep.subr.bf16.mxu0 0
    %581 = vmatpush1.bf16.msra.mxu0 0
    %582 = vmatprep.subr.bf16.mxu0 0
    %583 = vmatpush1.bf16.msra.mxu0 0
    %584 = vmatprep.subr.bf16.mxu0 0
    %585 = vmatpush1.bf16.msra.mxu0 0
    %586 = vmatprep.subr.bf16.mxu0 0
    %587 = vmatpush1.bf16.msra.mxu0 0
    %588 = vmatprep.subr.bf16.mxu0 0
    %589 = vmatpush1.bf16.msra.mxu0 0
    %590 = vmatprep.subr.bf16.mxu0 0
    %591 = vmatpush1.bf16.msra.mxu0 0
    %592 = vmatprep.subr.bf16.mxu0 0
    %593 = vmatpush1.bf16.msra.mxu0 0
    %594 = vmatprep.mubr.bf16.mxu0 0
    %595 = vmatmul.mubr.bf16.gmra.mrb[0].mxu0 %v513
    %v596 = vpop.f32.mrb[0].mxu0
    %v597 = vadd.f32 0.0, %v596
    %v598 = vpop.f32.mrb[0].mxu0
    %v599 = vpop.f32.mrb[0].mxu0
    %v600 = vpop.f32.mrb[0].mxu0
    %601 = vdwg.mxu0
    %v602 = vrot.slane %v597, 4
    %v603 = vadd.f32 %v597, %v602
    %v604 = vrot.slane %v603, 2
    %v605 = vadd.f32 %v603, %v604
    %v606 = vrot.slane %v605, 1
    %v607 = vadd.f32 %v605, %v606
    %v608 = vmul.f32 %v607, %v190
    %v609 = vmul.f32 %v597, %v597
    %v610 = vrot.slane %v609, 4
    %v611 = vadd.f32 %v609, %v610
    %v612 = vrot.slane %v611, 2
    %v613 = vadd.f32 %v611, %v612
    %v614 = vrot.slane %v613, 1
    %v615 = vadd.f32 %v613, %v614
    %v616 = vmul.f32 %v615, %v190
    %v617 = vmul.f32 %v608, %v608
    %v618 = vsub.f32 %v616, %v617
    %v619 = vmax.f32 %v618, 0.0
    %v620 = vsub.f32 %v597, %v608
    %v621 = vadd.f32 %v619, 1e-05
    %v622 = vrsqrt.pop %v621
    %v623 = vmul.f32 %v620, %v622
    %v624 = vmax.f32 %v623, 0.0
    %s625 = scalar_lea.vmem [#allocation7], 192
    %v626 = vld [vmem:[%s625] sm:$0xf]
    %v627 = vld [vmem:[%s625 + $0x4] sm:$0xf]
    %v628 = vld [vmem:[%s625 + $0x8] sm:$0xf]
    %v629 = vld [vmem:[%s625 + $0xc] sm:$0xf]
    %v630 = vld [vmem:[%s625 + $0x10] sm:$0xf]
    %v631 = vld [vmem:[%s625 + $0x14] sm:$0xf]
    %v632 = vld [vmem:[%s625 + $0x18] sm:$0xf]
    %v633 = vld [vmem:[%s625 + $0x1c] sm:$0xf]
    %v634 = vld [vmem:[%s625 + $0x20] sm:$0xf]
    %v635 = vld [vmem:[%s625 + $0x24] sm:$0xf]
    %v636 = vld [vmem:[%s625 + $0x28] sm:$0xf]
    %v637 = vld [vmem:[%s625 + $0x2c] sm:$0xf]
    %v638 = vld [vmem:[%s625 + $0x30] sm:$0xf]
    %v639 = vld [vmem:[%s625 + $0x34] sm:$0xf]
    %v640 = vld [vmem:[%s625 + $0x38] sm:$0xf]
    %v641 = vld [vmem:[%s625 + $0x3c] sm:$0xf]
    %v642 = vpack.c.bf16 %v624, %v624
    %s643 = scalar_lea.vmem %s3, 1
    %v644 = vld [vmem:[%s643] sm:$0x1]
    %v646 = vlaneseq
    %v647 = vshrl.u32 %v646, 7
    %v648 = vsub.s32 0, %v647
    %v649 = vrot.slane %v644, %v648
    %v667 = vunpack.c.l.b16 %v626
    %v668 = vunpack.c.l.b16 %v627
    %v669 = vunpack.c.l.b16 %v628
    %v670 = vunpack.c.l.b16 %v629
    %v671 = vunpack.c.l.b16 %v630
    %v672 = vunpack.c.l.b16 %v631
    %v673 = vunpack.c.l.b16 %v632
    %v674 = vunpack.c.l.b16 %v633
    %v675 = vunpack.c.l.b16 %v634
    %v676 = vunpack.c.l.b16 %v635
    %v677 = vunpack.c.l.b16 %v636
    %v678 = vunpack.c.l.b16 %v637
    %v679 = vunpack.c.l.b16 %v638
    %v680 = vunpack.c.l.b16 %v639
    %v681 = vunpack.c.l.b16 %v640
    %v682 = vunpack.c.l.b16 %v641
    %v683 = vpack.c.b16 %v668, %v667
    %v684 = vpack.c.b16 %v670, %v669
    %v685 = vpack.c.b16 %v672, %v671
    %v686 = vpack.c.b16 %v674, %v673
    %v687 = vpack.c.b16 %v676, %v675
    %v688 = vpack.c.b16 %v678, %v677
    %v689 = vpack.c.b16 %v680, %v679
    %v690 = vpack.c.b16 %v682, %v681
    %699 = vmatprep.subr.bf16.mxu0 0
    %700 = vmatpush1.bf16.msra.mxu0 %v683
    %701 = vmatprep.subr.bf16.mxu0 0
    %702 = vmatpush1.bf16.msra.mxu0 %v684
    %703 = vmatprep.subr.bf16.mxu0 0
    %704 = vmatpush1.bf16.msra.mxu0 %v685
    %705 = vmatprep.subr.bf16.mxu0 0
    %706 = vmatpush1.bf16.msra.mxu0 %v686
    %707 = vmatprep.subr.bf16.mxu0 0
    %708 = vmatpush1.bf16.msra.mxu0 %v687
    %709 = vmatprep.subr.bf16.mxu0 0
    %710 = vmatpush1.bf16.msra.mxu0 %v688
    %711 = vmatprep.subr.bf16.mxu0 0
    %712 = vmatpush1.bf16.msra.mxu0 %v689
    %713 = vmatprep.subr.bf16.mxu0 0
    %714 = vmatpush1.bf16.msra.mxu0 %v690
    %715 = vmatprep.subr.bf16.mxu0 0
    %716 = vmatpush1.bf16.msra.mxu0 0
    %717 = vmatprep.subr.bf16.mxu0 0
    %718 = vmatpush1.bf16.msra.mxu0 0
    %719 = vmatprep.subr.bf16.mxu0 0
    %720 = vmatpush1.bf16.msra.mxu0 0
    %721 = vmatprep.subr.bf16.mxu0 0
    %722 = vmatpush1.bf16.msra.mxu0 0
    %723 = vmatprep.subr.bf16.mxu0 0
    %724 = vmatpush1.bf16.msra.mxu0 0
    %725 = vmatprep.subr.bf16.mxu0 0
    %726 = vmatpush1.bf16.msra.mxu0 0
    %727 = vmatprep.subr.bf16.mxu0 0
    %728 = vmatpush1.bf16.msra.mxu0 0
    %729 = vmatprep.subr.bf16.mxu0 0
    %730 = vmatpush1.bf16.msra.mxu0 0
    %731 = vmatprep.mubr.bf16.mxu0 0
    %732 = vmatmul.mubr.bf16.gmra.mrb[0].mxu0 %v642
    %v733 = vpop.f32.mrb[0].mxu0
    %v734 = vadd.f32 %v649, %v733
    %v735 = vpop.f32.mrb[0].mxu0
    %v736 = vpop.f32.mrb[0].mxu0
    %v737 = vpop.f32.mrb[0].mxu0
    %738 = vdwg.mxu0
    %v739 = vadd.f32 %v734, %v472
    %v740 = vld [vmem:[#allocation8] sm:$0xf]
    %v741 = vld [vmem:[#allocation8 + $0x4] sm:$0xf]
    %v742 = vld [vmem:[#allocation8 + $0x8] sm:$0xf]
    %v743 = vld [vmem:[#allocation8 + $0xc] sm:$0xf]
    %v744 = vld [vmem:[#allocation8 + $0x10] sm:$0xf]
    %v745 = vld [vmem:[#allocation8 + $0x14] sm:$0xf]
    %v746 = vld [vmem:[#allocation8 + $0x18] sm:$0xf]
    %v747 = vld [vmem:[#allocation8 + $0x1c] sm:$0xf]
    %v748 = vld [vmem:[#allocation8 + $0x20] sm:$0xf]
    %v749 = vld [vmem:[#allocation8 + $0x24] sm:$0xf]
    %v750 = vld [vmem:[#allocation8 + $0x28] sm:$0xf]
    %v751 = vld [vmem:[#allocation8 + $0x2c] sm:$0xf]
    %v752 = vld [vmem:[#allocation8 + $0x30] sm:$0xf]
    %v753 = vld [vmem:[#allocation8 + $0x34] sm:$0xf]
    %v754 = vld [vmem:[#allocation8 + $0x38] sm:$0xf]
    %v755 = vld [vmem:[#allocation8 + $0x3c] sm:$0xf]
    %v756 = vpack.c.bf16 %v739, %v739
    %v757 = vld [vmem:[%s5] sm:$0x1]
    %v759 = vlaneseq
    %v760 = vshrl.u32 %v759, 7
    %v761 = vsub.s32 0, %v760
    %v762 = vrot.slane %v757, %v761
    %v780 = vunpack.c.l.b16 %v740
    %v781 = vunpack.c.l.b16 %v741
    %v782 = vunpack.c.l.b16 %v742
    %v783 = vunpack.c.l.b16 %v743
    %v784 = vunpack.c.l.b16 %v744
    %v785 = vunpack.c.l.b16 %v745
    %v786 = vunpack.c.l.b16 %v746
    %v787 = vunpack.c.l.b16 %v747
    %v788 = vunpack.c.l.b16 %v748
    %v789 = vunpack.c.l.b16 %v749
    %v790 = vunpack.c.l.b16 %v750
    %v791 = vunpack.c.l.b16 %v751
    %v792 = vunpack.c.l.b16 %v752
    %v793 = vunpack.c.l.b16 %v753
    %v794 = vunpack.c.l.b16 %v754
    %v795 = vunpack.c.l.b16 %v755
    %v796 = vpack.c.b16 %v781, %v780
    %v797 = vpack.c.b16 %v783, %v782
    %v798 = vpack.c.b16 %v785, %v784
    %v799 = vpack.c.b16 %v787, %v786
    %v800 = vpack.c.b16 %v789, %v788
    %v801 = vpack.c.b16 %v791, %v790
    %v802 = vpack.c.b16 %v793, %v792
    %v803 = vpack.c.b16 %v795, %v794
    %812 = vmatprep.subr.bf16.mxu0 0
    %813 = vmatpush1.bf16.msra.mxu0 %v796
    %814 = vmatprep.subr.bf16.mxu0 0
    %815 = vmatpush1.bf16.msra.mxu0 %v797
    %816 = vmatprep.subr.bf16.mxu0 0
    %817 = vmatpush1.bf16.msra.mxu0 %v798
    %818 = vmatprep.subr.bf16.mxu0 0
    %819 = vmatpush1.bf16.msra.mxu0 %v799
    %820 = vmatprep.subr.bf16.mxu0 0
    %821 = vmatpush1.bf16.msra.mxu0 %v800
    %822 = vmatprep.subr.bf16.mxu0 0
    %823 = vmatpush1.bf16.msra.mxu0 %v801
    %824 = vmatprep.subr.bf16.mxu0 0
    %825 = vmatpush1.bf16.msra.mxu0 %v802
    %826 = vmatprep.subr.bf16.mxu0 0
    %827 = vmatpush1.bf16.msra.mxu0 %v803
    %828 = vmatprep.subr.bf16.mxu0 0
    %829 = vmatpush1.bf16.msra.mxu0 0
    %830 = vmatprep.subr.bf16.mxu0 0
    %831 = vmatpush1.bf16.msra.mxu0 0
    %832 = vmatprep.subr.bf16.mxu0 0
    %833 = vmatpush1.bf16.msra.mxu0 0
    %834 = vmatprep.subr.bf16.mxu0 0
    %835 = vmatpush1.bf16.msra.mxu0 0
    %836 = vmatprep.subr.bf16.mxu0 0
    %837 = vmatpush1.bf16.msra.mxu0 0
    %838 = vmatprep.subr.bf16.mxu0 0
    %839 = vmatpush1.bf16.msra.mxu0 0
    %840 = vmatprep.subr.bf16.mxu0 0
    %841 = vmatpush1.bf16.msra.mxu0 0
    %842 = vmatprep.subr.bf16.mxu0 0
    %843 = vmatpush1.bf16.msra.mxu0 0
    %844 = vmatprep.mubr.bf16.mxu0 0
    %845 = vmatmul.mubr.bf16.gmra.mrb[0].mxu0 %v756
    %v846 = vpop.f32.mrb[0].mxu0
    %v847 = vadd.f32 %v762, %v846
    %v848 = vpop.f32.mrb[0].mxu0
    %v849 = vpop.f32.mrb[0].mxu0
    %v850 = vpop.f32.mrb[0].mxu0
    %851 = vdwg.mxu0
    %852 = vst [vmem:[#allocation10] sm:$0xff] %v847
    // Predicated region
    $region42: #{tpu_custom_call.1} parent=1 // pred_check
      _
    $region43: #{tpu_custom_call.1} parent=1 // pred_check_branch
      %854 = sbr.rel (0) target = $region45
    $region44: #{tpu_custom_call.1} parent=1 // pred_region
      %s856 = ssub.s32 128, 128
      %857 = vsyncadd [#allocation4], %s856
      %s859 = sshll.u32 [#allocation10], 4
      %s860 = int_to_ptr.vmem [resolvable:$true] %s859
      %862 = dma.vmem_to_hbm [thread:$0]  %s860, 128, %s6, [#allocation4]
    $region45: #{tpu_custom_call.1} parent=1 // pred_fallthru
      _
    // Predicated region
    $region46: #{tpu_custom_call.1} parent=1 // pred_check
      _
    $region47: #{tpu_custom_call.1} parent=1 // pred_check_branch
      %864 = sbr.rel (0) target = $region49
    $region48: #{tpu_custom_call.1} parent=1 // pred_region
      %865 = dma.done [#allocation4], 128
    $region49: #{tpu_custom_call.1} parent=1 // pred_fallthru
      _
    %866 = vsyncpa [#allocation3], 1
    %867 = vsyncpa [#allocation6], 1
    %868 = vsyncpa [#allocation9], 1
    %869 = vsyncpa [#allocation4], 1

</llo_original>
